<compile_context>
chip_gen: v7x
topology: tpu7x:2x2x1
jax: 0.10.0
libtpu: 0.0.40
codegen_flags: <defaults>
</compile_context>

<pallas_src>
from typing import NamedTuple

import jax
import jax.numpy as jnp
from jax import lax
from jax.experimental import pallas as pl
from jax.experimental.pallas import tpu as pltpu


def _round_up(x, m):
    return ((x + m - 1) // m) * m


_INV_SQRT2 = 0.7071067811865476


def _gelu_exact_f32(g):
    # exact GELU (matches torch F.gelu default, approximate='none')
    return 0.5 * g * (1.0 + lax.erf(g * jnp.float32(_INV_SQRT2)))


# ----------------------------------------------------------------------------
# Kernels
# ----------------------------------------------------------------------------
def _geglu_kernel(x_ref, w_ref, b_ref, o_ref, acc_v, acc_g):
    """Multi-K-block path: f32 accumulators seeded with the bias at k == 0."""
    k = pl.program_id(2)

    @pl.when(k == 0)
    def _init():
        bias = b_ref[...].astype(jnp.float32)          # (2, tile_n)
        acc_v[...] = jnp.broadcast_to(bias[0:1, :], acc_v.shape)
        acc_g[...] = jnp.broadcast_to(bias[1:2, :], acc_g.shape)

    # Native-dtype operands straight into the MXU, f32 accumulation.
    x = x_ref[...]
    acc_v[...] += jnp.dot(x, w_ref[0], preferred_element_type=jnp.float32)
    acc_g[...] += jnp.dot(x, w_ref[1], preferred_element_type=jnp.float32)

    @pl.when(k == pl.num_programs(2) - 1)
    def _finalize():
        o_ref[...] = (acc_v[...] * _gelu_exact_f32(acc_g[...])).astype(o_ref.dtype)


def _geglu_kernel_k1(x_ref, w_ref, b_ref, o_ref):
    """Single-K-block path: no scratch accumulators, straight to o_ref."""
    x = x_ref[...]
    bias = b_ref[...].astype(jnp.float32)               # (2, tile_n)
    val = jnp.dot(x, w_ref[0], preferred_element_type=jnp.float32) + bias[0:1, :]
    gate = jnp.dot(x, w_ref[1], preferred_element_type=jnp.float32) + bias[1:2, :]
    o_ref[...] = (val * _gelu_exact_f32(gate)).astype(o_ref.dtype)


# ----------------------------------------------------------------------------
# Parameter packing (done once at setup, not per call)
# ----------------------------------------------------------------------------
class GEGLUParams(NamedTuple):
    w: jax.Array      # (2, Kp, Np): [0]=value half, [1]=gate half, pre-transposed + padded
    b: jax.Array      # (2, Np)
    dim_in: int
    dim_out: int
    tile_n: int
    tile_k: int


def pack_geglu_params(weight, bias, *, tile_n=1024, tile_k=512):
    """weight: (2*dim_out, dim_in) torch nn.Linear layout; bias: (2*dim_out,).

    chunk(2, dim=-1) of the Linear output == first / second dim_out rows of weight.
    Pre-transposes each half to (dim_in, dim_out) for x @ W, stacks the halves,
    and zero-pads to the tile grid once so per-call work is just the x padding.
    """
    two_dim_out, dim_in = weight.shape
    dim_out = two_dim_out // 2

    tile_n = min(tile_n, _round_up(dim_out, 128))
    tile_k = min(tile_k, _round_up(dim_in, 128))
    Kp = _round_up(dim_in, tile_k)
    Np = _round_up(dim_out, tile_n)

    w = weight.reshape(2, dim_out, dim_in)               # [0]=value, [1]=gate
    w = jnp.transpose(w, (0, 2, 1))                      # (2, dim_in, dim_out)
    if Kp != dim_in or Np != dim_out:
        w = jnp.pad(w, ((0, 0), (0, Kp - dim_in), (0, Np - dim_out)))
    b = bias.reshape(2, dim_out)
    if Np != dim_out:
        b = jnp.pad(b, ((0, 0), (0, Np - dim_out)))

    return GEGLUParams(w=w, b=b, dim_in=dim_in, dim_out=dim_out,
                       tile_n=tile_n, tile_k=tile_k)


# ----------------------------------------------------------------------------
# Wrapper
# ----------------------------------------------------------------------------
def geglu_pallas(x, params: GEGLUParams, *, tile_m=512):
    """x: (..., dim_in) -> (..., dim_out). Both matmuls + bias + GELU + gate in-kernel."""
    orig_shape = x.shape
    dim_in, dim_out = params.dim_in, params.dim_out
    assert orig_shape[-1] == dim_in
    tile_n, tile_k = params.tile_n, params.tile_k
    Kp, Np = params.w.shape[1], params.w.shape[2]

    x2d = x.reshape(-1, dim_in)
    M = x2d.shape[0]

    # Sublane-aligned M tile, clamped to the problem size.
    sublane = 16 if x.dtype == jnp.bfloat16 else 8
    m_aligned = _round_up(max(M, 1), sublane)
    tile_m = min(tile_m, m_aligned)

    # v7x megacore: make sure the parallel (i, j) grid has >= 2 blocks when possible
    # so both TensorCores get work.
    n_blocks = pl.cdiv(Np, tile_n)
    if pl.cdiv(M, tile_m) * n_blocks < 2 and m_aligned >= 2 * sublane:
        tile_m = _round_up(-(-m_aligned // 2), sublane)

    Mp = _round_up(M, tile_m)
    # Zero-padding of M rows / K cols is exact for the matmul; padded rows dropped below.
    if Mp != M or Kp != dim_in:
        x2d = jnp.pad(x2d, ((0, Mp - M), (0, Kp - dim_in)))

    m_blocks = Mp // tile_m
    k_blocks = Kp // tile_k
    grid_mn = (m_blocks, Np // tile_n)

    x_isz = jnp.dtype(x2d.dtype).itemsize
    w_isz = jnp.dtype(params.w.dtype).itemsize
    out_isz = x_isz

    # Explicit VMEM budget: double-buffered I/O blocks (+ f32 accumulators when K > 1),
    # capped at v7x's 64 MiB per-core physical VMEM.
    io_bytes = 2 * (tile_m * tile_k * x_isz              # x block
                    + 2 * tile_k * tile_n * w_isz        # stacked weight block
                    + 2 * tile_n * w_isz                 # stacked bias block
                    + tile_m * tile_n * out_isz)         # out block
    acc_bytes = 0 if k_blocks == 1 else 2 * tile_m * tile_n * 4
    vmem_limit = int(min(64 * 1024 * 1024, io_bytes + acc_bytes + (2 << 20)))

    # Advisory cost: padded dims, weights re-streamed per M tile, x per N tile.
    cost = pl.CostEstimate(
        flops=2 * 2 * Mp * Kp * Np,
        transcendentals=Mp * Np,                         # erf per output element
        bytes_accessed=(Mp * Kp * x_isz * grid_mn[1]
                        + params.w.size * w_isz * m_blocks
                        + params.b.size * w_isz * m_blocks
                        + Mp * Np * out_isz),
    )

    if k_blocks == 1:
        grid = grid_mn
        in_specs = [
            pl.BlockSpec((tile_m, tile_k), lambda i, j: (i, 0)),         # x
            pl.BlockSpec((2, tile_k, tile_n), lambda i, j: (0, 0, j)),   # stacked weights
            pl.BlockSpec((2, tile_n), lambda i, j: (0, j)),              # stacked biases
        ]
        out_specs = pl.BlockSpec((tile_m, tile_n), lambda i, j: (i, j))
        scratch = []
        kernel = _geglu_kernel_k1
        dims = ("parallel", "parallel")
    else:
        grid = grid_mn + (k_blocks,)
        in_specs = [
            pl.BlockSpec((tile_m, tile_k), lambda i, j, k: (i, k)),        # x
            pl.BlockSpec((2, tile_k, tile_n), lambda i, j, k: (0, k, j)),  # stacked weights
            pl.BlockSpec((2, tile_n), lambda i, j, k: (0, j)),             # stacked biases
        ]
        out_specs = pl.BlockSpec((tile_m, tile_n), lambda i, j, k: (i, j))
        scratch = [pltpu.VMEM((tile_m, tile_n), jnp.float32),   # value accumulator
                   pltpu.VMEM((tile_m, tile_n), jnp.float32)]   # gate  accumulator
        kernel = _geglu_kernel
        dims = ("parallel", "parallel", "arbitrary")

    out = pl.pallas_call(
        kernel,
        out_shape=jax.ShapeDtypeStruct((Mp, Np), x.dtype),
        grid_spec=pltpu.PrefetchScalarGridSpec(
            num_scalar_prefetch=0,
            grid=grid,
            in_specs=in_specs,
            out_specs=out_specs,
            scratch_shapes=scratch,
        ),
        compiler_params=pltpu.CompilerParams(
            dimension_semantics=dims,
            vmem_limit_bytes=vmem_limit,
        ),
        cost_estimate=cost,
    )(x2d, params.w, params.b)

    out = out[:M, :dim_out]
    return out.reshape(*orig_shape[:-1], dim_out)


# ----------------------------------------------------------------------------
# Reference + test
# ----------------------------------------------------------------------------
def init_linear_params(key, dim_in, dim_out, dtype=jnp.float32):
    """Deterministic init matching nn.Linear(dim_in, dim_out * 2) layout."""
    kw, kb = jax.random.split(key)
    bound = 1.0 / (dim_in ** 0.5)
    weight = jax.random.uniform(kw, (2 * dim_out, dim_in), dtype, -bound, bound)
    bias = jax.random.uniform(kb, (2 * dim_out,), dtype, -bound, bound)
    return weight, bias


def geglu_reference(x, weight, bias):
    proj = jnp.matmul(x, weight.T, precision=jax.lax.Precision.HIGHEST) + bias
    val, gate = jnp.split(proj, 2, axis=-1)
    return val * jax.nn.gelu(gate, approximate=False)


if __name__ == "__main__":
    key = jax.random.PRNGKey(0)
    k1, k2, k3, k4 = jax.random.split(key, 4)

    # Small case (exercises the single-K fast path + M/N padding + megacore clamp).
    batch, seq, dim_in, dim_out = 2, 8, 32, 32
    x = jax.random.normal(k1, (batch, seq, dim_in), dtype=jnp.float32)
    weight, bias = init_linear_params(k2, dim_in, dim_out)
    params = pack_geglu_params(weight, bias)
    out = jax.block_until_ready(geglu_pallas(x, params))
    ref = geglu_reference(x, weight, bias)
    assert out.shape == (batch, seq, dim_out)
    assert jnp.allclose(out, ref, atol=1e-5, rtol=1e-5)

    # Slightly larger case (exercises the K-reduction accumulator path).
    batch2, seq2, dim_in2, dim_out2 = 2, 8, 640, 256
    x2 = jax.random.normal(k3, (batch2, seq2, dim_in2), dtype=jnp.float32)
    weight2, bias2 = init_linear_params(k4, dim_in2, dim_out2)
    params2 = pack_geglu_params(weight2, bias2)
    out2 = jax.block_until_ready(geglu_pallas(x2, params2))
    ref2 = geglu_reference(x2, weight2, bias2)
    assert out2.shape == (batch2, seq2, dim_out2)
    assert jnp.allclose(out2, ref2, atol=1e-4, rtol=1e-4)

    print("KERNEL_OK")
</pallas_src>

<mosaic_0001>
module attributes {stable_mosaic.version = 11 : i64} {
  func.func @_geglu_kernel_k1(%arg0: i32, %arg1: i32, %arg2: memref<8x128xf32, #tpu.memory_space<vmem>>, %arg3: memref<2x128x128xf32, #tpu.memory_space<vmem>>, %arg4: memref<2x128xf32, #tpu.memory_space<vmem>>, %arg5: memref<8x128xf32, #tpu.memory_space<vmem>>) attributes {dimension_semantics = [#tpu.dimension_semantics<parallel>, #tpu.dimension_semantics<parallel>], iteration_bounds = array<i64: 2, 1>, scalar_prefetch = 0 : i64, scratch_operands = 0 : i64, tpu.core_type = #tpu.core_type<tc>, window_params = [{transform_indices = @transform_0, window_bounds = array<i64: 8, 128>}, {transform_indices = @transform_1, window_bounds = array<i64: 2, 128, 128>}, {transform_indices = @transform_2, window_bounds = array<i64: 2, 128>}, {transform_indices = @transform_3, window_bounds = array<i64: 8, 128>}]} {
    %c0 = arith.constant 0 : index
    %c0_0 = arith.constant 0 : index
    %0 = vector.load %arg2[%c0, %c0_0] : memref<8x128xf32, #tpu.memory_space<vmem>>, vector<8x128xf32>
    %c0_1 = arith.constant 0 : index
    %c0_2 = arith.constant 0 : index
    %1 = vector.load %arg4[%c0_1, %c0_2] : memref<2x128xf32, #tpu.memory_space<vmem>>, vector<2x128xf32>
    %c0_3 = arith.constant 0 : index
    %c0_4 = arith.constant 0 : index
    %c0_5 = arith.constant 0 : index
    %2 = vector.load %arg3[%c0_3, %c0_4, %c0_5] : memref<2x128x128xf32, #tpu.memory_space<vmem>>, vector<1x128x128xf32>
    %3 = vector.shape_cast %2 : vector<1x128x128xf32> to vector<128x128xf32>
    %cst = arith.constant dense<0.000000e+00> : vector<8x128xf32>
    %4 = tpu.matmul %0, %3, %cst {dimension_numbers = #tpu.dot_dimension_numbers<[1], [0], [0], [1], [0, 0, 1, 1], [], []>} : vector<8x128xf32>, vector<128x128xf32>, vector<8x128xf32> -> vector<8x128xf32>
    %5 = vector.extract_strided_slice %1 {offsets = [0, 0], sizes = [1, 128], strides = [1, 1]} : vector<2x128xf32> to vector<1x128xf32>
    %6 = vector.broadcast %5 : vector<1x128xf32> to vector<8x128xf32>
    %7 = arith.addf %4, %6 : vector<8x128xf32>
    %c1 = arith.constant 1 : index
    %c0_6 = arith.constant 0 : index
    %c0_7 = arith.constant 0 : index
    %8 = vector.load %arg3[%c1, %c0_6, %c0_7] : memref<2x128x128xf32, #tpu.memory_space<vmem>>, vector<1x128x128xf32>
    %9 = vector.shape_cast %8 : vector<1x128x128xf32> to vector<128x128xf32>
    %cst_8 = arith.constant dense<0.000000e+00> : vector<8x128xf32>
    %10 = tpu.matmul %0, %9, %cst_8 {dimension_numbers = #tpu.dot_dimension_numbers<[1], [0], [0], [1], [0, 0, 1, 1], [], []>} : vector<8x128xf32>, vector<128x128xf32>, vector<8x128xf32> -> vector<8x128xf32>
    %11 = vector.extract_strided_slice %1 {offsets = [1, 0], sizes = [1, 128], strides = [1, 1]} : vector<2x128xf32> to vector<1x128xf32>
    %12 = vector.broadcast %11 : vector<1x128xf32> to vector<8x128xf32>
    %13 = arith.addf %10, %12 : vector<8x128xf32>
    %cst_9 = arith.constant 5.000000e-01 : f32
    %14 = vector.broadcast %cst_9 : f32 to vector<8x128xf32>
    %15 = arith.mulf %14, %13 : vector<8x128xf32>
    %cst_10 = arith.constant 0.707106769 : f32
    %16 = vector.broadcast %cst_10 : f32 to vector<8x128xf32>
    %17 = arith.mulf %13, %16 : vector<8x128xf32>
    %18 = math.erf %17 : vector<8x128xf32>
    %cst_11 = arith.constant 1.000000e+00 : f32
    %19 = vector.broadcast %cst_11 : f32 to vector<8x128xf32>
    %20 = arith.addf %19, %18 : vector<8x128xf32>
    %21 = arith.mulf %15, %20 : vector<8x128xf32>
    %22 = arith.mulf %7, %21 : vector<8x128xf32>
    %c0_12 = arith.constant 0 : index
    %c0_13 = arith.constant 0 : index
    %23 = vector.load %arg5[%c0_12, %c0_13] : memref<8x128xf32, #tpu.memory_space<vmem>>, vector<8x128xf32>
    tpu.vector_store %arg5[%c0_12, %c0_13], %22 {strides = array<i32>} : memref<8x128xf32, #tpu.memory_space<vmem>>, vector<8x128xf32>,
    return
  }
  func.func @transform_0(%arg0: i32, %arg1: i32) -> (i32, i32) {
    %c0_i32 = arith.constant 0 : i32
    %c0_i32_0 = arith.constant 0 : i32
    return %arg0, %c0_i32 : i32, i32
  }
  func.func @transform_1(%arg0: i32, %arg1: i32) -> (i32, i32, i32) {
    %c0_i32 = arith.constant 0 : i32
    %c0_i32_0 = arith.constant 0 : i32
    %c0_i32_1 = arith.constant 0 : i32
    return %c0_i32, %c0_i32_0, %arg1 : i32, i32, i32
  }
  func.func @transform_2(%arg0: i32, %arg1: i32) -> (i32, i32) {
    %c0_i32 = arith.constant 0 : i32
    %c0_i32_0 = arith.constant 0 : i32
    return %c0_i32, %arg1 : i32, i32
  }
  func.func @transform_3(%arg0: i32, %arg1: i32) -> (i32, i32) {
    %c0_i32 = arith.constant 0 : i32
    return %arg0, %arg1 : i32, i32
  }
}

</mosaic_0001>

<llo_original>
// kernel: tpu_custom_call.1
$region0: #{tpu_custom_call.1}
  #allocation0 [shape = 'u32[]', space=smem, size = 0x4, offset = 0x4, fixed_abs, tag = 'smem constant byte address 0x4 - core index']
  #allocation1 [shape = 'u32[144,128]{1,0:T(1,128)}', space=vmem, size = 0x12000, scoped, tag = 'internal scratch']
  %s0 = inlined_call_operand.hbm [shape: f32[16,128], index: 0, kind: input, shape index: {}]
  %s1 = inlined_call_operand.hbm [shape: f32[2,128,128], index: 1, kind: input, shape index: {}]
  %s2 = inlined_call_operand.vmem [shape: f32[2,128], index: 2, kind: input, shape index: {}]
  %s3 = inlined_call_operand.hbm [shape: f32[16,128], index: 3, kind: output, shape index: {}]
  %s4 = sld [smem:[#allocation0]]
  $region53: #{tpu_custom_call.1} parent=0
    _
  %s6 = ssub.s32 1, %s4
  %s7 = scalar_select 0, %s6, %s4
  $region1: #{tpu_custom_call.1} parent=0
    #allocation2 [shape = 'u8[8192]{0}', space=vmem, size = 0x2000, scoped, tag = 'input window, operand 0']
    #allocation3 [shape = 's32[2]{0}', space=sflag, size = 0x8, scoped, tag = 'scoped memory for tpu_custom_call.1']
    #allocation4 [shape = 's32[2]{0}', space=sflag, size = 0x8, scoped, tag = 'scoped memory for tpu_custom_call.1']
    #allocation5 [shape = 'u8[131072]{0}', space=vmem, size = 0x20000, scoped, tag = 'input window, operand 1, single buffered']
    #allocation6 [shape = 's32[1]{0}', space=sflag, size = 0x4, scoped, tag = 'scoped memory for tpu_custom_call.1']
    #allocation7 [shape = 'u8[8192]{0}', space=vmem, size = 0x2000, scoped, tag = 'output window, operand 0']
    %8 = vsyncpa [#allocation3], 0
    %s9 = scalar_lea.sflag [#allocation3], 1
    %10 = vsyncpa %s9, 0
    %11 = vsyncpa [#allocation6], 0
    %12 = vsyncpa [#allocation4], 0
    %s13 = scalar_lea.sflag [#allocation4], 1
    %14 = vsyncpa %s13, 0
    loop: start=0, step=1, limit=4
    $region2: #{tpu_custom_call.1} parent=1 // loop_pre_header
      _
    $region3: #{tpu_custom_call.1} parent=1 // loop_header
      %s16 = sphi 0, %s20
      %p17 = scmp.ge.s32.totalorder %s16, 4
      %s23 = sphi 0, %s35
      %s24 = sphi 0, %s31
      %s25 = sphi 0, %s23
      %s26 = sphi 0, %s24
      %s27 = sphi 0, %s25
      %s28 = sphi 0, %s26
      %s38 = sphi 0, %s40
      %s41 = sphi 0, %s38
      %s42 = sphi 0, %s41
      %s58 = sphi 0, %s42
      %s64 = sphi 0, %s66
      %s67 = sphi 0, %s64
      %s68 = sphi 0, %s67
      %s84 = sphi 0, %s68
      %s90 = sphi 0, %s92
      %s93 = sphi 0, %s90
      %s94 = sphi 0, %s93
      %s110 = sphi 0, %s94
      %s118 = sphi 0, %s120
      %s121 = sphi 0, %s118
      %s122 = sphi 0, %s121
      %s138 = sphi 0, %s122
    $region4: #{tpu_custom_call.1} parent=1 // loop_header_branch
      %19 = sbr.rel (%p17) target = $region8
    $region5: #{tpu_custom_call.1} parent=1 // loop_body
      %s21 = ssub.s32 %s16, 1
      %s22 = ssub.s32 %s16, 2
      %s29 = sadd.s32 1, %s24
      %p30 = scmp.ge.s32.totalorder %s29, 1
      %s31 = scalar_select %p30, 0, %s29
      %s32 = sadd.s32 1, %s23
      %s33 = scalar_select %p30, %s32, %s23
      %p34 = scmp.ge.s32.totalorder %s33, 2
      %s35 = scalar_select %p34, 0, %s33
      %s36 = ssub.s32 %s23, %s35
      %p37 = scmp.eq.s32.totalorder %s36, 0
      %s39 = sadd.s32 %s38, 1
      %s40 = scalar_select %p37, %s38, %s39
      %p43 = pneg %p37
      %p44 = scmp.eq.s32.totalorder %s16, 1
      %p45 = por %p43, %p44
      %p46 = scmp.ne.s32.totalorder %s38, %s41
      %p47 = scmp.eq.s32.totalorder %s16, 0
      %p48 = por %p46, %p47
      %p49 = scmp.ne.s32.totalorder %s38, %s41
      %p50 = scmp.eq.s32.totalorder %s21, 1
      %p51 = por %p49, %p50
      %p52 = scmp.ne.s32.totalorder %s41, %s42
      %p53 = scmp.eq.s32.totalorder %s21, 0
      %p54 = por %p52, %p53
      %p55 = scmp.ne.s32.totalorder %s41, %s42
      %p56 = scmp.eq.s32.totalorder %s22, 1
      %p57 = por %p55, %p56
      %p59 = scmp.ne.s32.totalorder %s42, %s58
      %p60 = scmp.eq.s32.totalorder %s22, 0
      %p61 = por %p59, %p60
      %s62 = ssub.s32 %s24, %s31
      %p63 = scmp.eq.s32.totalorder %s62, 0
      %s65 = sadd.s32 %s64, 1
      %s66 = scalar_select %p63, %s64, %s65
      %p69 = pneg %p63
      %p70 = scmp.eq.s32.totalorder %s16, 1
      %p71 = por %p69, %p70
      %p72 = scmp.ne.s32.totalorder %s64, %s67
      %p73 = scmp.eq.s32.totalorder %s16, 0
      %p74 = por %p72, %p73
      %p75 = scmp.ne.s32.totalorder %s64, %s67
      %p76 = scmp.eq.s32.totalorder %s21, 1
      %p77 = por %p75, %p76
      %p78 = scmp.ne.s32.totalorder %s67, %s68
      %p79 = scmp.eq.s32.totalorder %s21, 0
      %p80 = por %p78, %p79
      %p81 = scmp.ne.s32.totalorder %s67, %s68
      %p82 = scmp.eq.s32.totalorder %s22, 1
      %p83 = por %p81, %p82
      %p85 = scmp.ne.s32.totalorder %s68, %s84
      %p86 = scmp.eq.s32.totalorder %s22, 0
      %p87 = por %p85, %p86
      %s88 = ssub.s32 %s24, %s31
      %p89 = scmp.eq.s32.totalorder %s88, 0
      %s91 = sadd.s32 %s90, 1
      %s92 = scalar_select %p89, %s90, %s91
      %p95 = pneg %p89
      %p96 = scmp.eq.s32.totalorder %s16, 1
      %p97 = por %p95, %p96
      %p98 = scmp.ne.s32.totalorder %s90, %s93
      %p99 = scmp.eq.s32.totalorder %s16, 0
      %p100 = por %p98, %p99
      %p101 = scmp.ne.s32.totalorder %s90, %s93
      %p102 = scmp.eq.s32.totalorder %s21, 1
      %p103 = por %p101, %p102
      %p104 = scmp.ne.s32.totalorder %s93, %s94
      %p105 = scmp.eq.s32.totalorder %s21, 0
      %p106 = por %p104, %p105
      %p107 = scmp.ne.s32.totalorder %s93, %s94
      %p108 = scmp.eq.s32.totalorder %s22, 1
      %p109 = por %p107, %p108
      %p111 = scmp.ne.s32.totalorder %s94, %s110
      %p112 = scmp.eq.s32.totalorder %s22, 0
      %p113 = por %p111, %p112
      %s114 = ssub.s32 %s23, %s35
      %s115 = ssub.s32 %s24, %s31
      %s116 = sor.u32 %s114, %s115
      %p117 = scmp.eq.s32.totalorder %s116, 0
      %s119 = sadd.s32 %s118, 1
      %s120 = scalar_select %p117, %s118, %s119
      %p123 = pneg %p117
      %p124 = scmp.eq.s32.totalorder %s16, 1
      %p125 = por %p123, %p124
      %p126 = scmp.ne.s32.totalorder %s118, %s121
      %p127 = scmp.eq.s32.totalorder %s16, 0
      %p128 = por %p126, %p127
      %p129 = scmp.ne.s32.totalorder %s118, %s121
      %p130 = scmp.eq.s32.totalorder %s21, 1
      %p131 = por %p129, %p130
      %p132 = scmp.ne.s32.totalorder %s121, %s122
      %p133 = scmp.eq.s32.totalorder %s21, 0
      %p134 = por %p132, %p133
      %p135 = scmp.ne.s32.totalorder %s121, %s122
      %p136 = scmp.eq.s32.totalorder %s22, 1
      %p137 = por %p135, %p136
      %p139 = scmp.ne.s32.totalorder %s122, %s138
      %p140 = scmp.eq.s32.totalorder %s22, 0
      %p141 = por %p139, %p140
      %p142 = scmp.le.s32.totalorder 1, %s16
      %p143 = scmp.lt.s32.totalorder %s16, 3
      %p144 = pnand %p142, %p143
      %p145 = pneg %p144
      // Predicated region
      $region9: #{tpu_custom_call.1} parent=5 // pred_check
        _
      $region10: #{tpu_custom_call.1} parent=5 // pred_check_branch
        %147 = sbr.rel (%p144) target = $region12
      $region11: #{tpu_custom_call.1} parent=5 // pred_region
        %s148 = ssub.s32 %s16, 1
        // Predicated region
        $region13: #{tpu_custom_call.1} parent=11 // pred_check
          %p149 = pneg %p80
        $region14: #{tpu_custom_call.1} parent=11 // pred_check_branch
          %151 = sbr.rel (%p149) target = $region16
        $region15: #{tpu_custom_call.1} parent=11 // pred_region
          %s153 = ssub.s32 4096, 4096
          %154 = vsyncadd [#allocation6], %s153
          %s155 = smul.addr %s26, 128
          %s156 = scalar_lea.hbm %s1, %s155
          %s157 = sshll.u32 [#allocation5], 4
          %s158 = int_to_ptr.vmem [resolvable:$true] %s157
          %163 = dma.hbm_to_vmem [thread:$0]  %s156, 4096, %s158, [#allocation6], 128, 128, 8
        $region16: #{tpu_custom_call.1} parent=11 // pred_fallthru
          _
        // Predicated region
        $region17: #{tpu_custom_call.1} parent=11 // pred_check
          %p164 = pneg %p106
        $region18: #{tpu_custom_call.1} parent=11 // pred_check_branch
          %166 = sbr.rel (%p164) target = $region20
        $region19: #{tpu_custom_call.1} parent=11 // pred_region
          %p167 = scmp.lt.s32.totalorder %s26, 0
          %s168 = scalar_select %p167, %s26, 0
          %s169 = smul.addr %s168, 2
          %s170 = scalar_lea.vmem %s2, %s169
        $region20: #{tpu_custom_call.1} parent=11 // pred_fallthru
          _
      $region12: #{tpu_custom_call.1} parent=5 // pred_fallthru
        _
      %p171 = scmp.lt.s32.totalorder %s16, 2
      // Predicated region
      $region21: #{tpu_custom_call.1} parent=5 // pred_check
        %p172 = pneg %p171
      $region22: #{tpu_custom_call.1} parent=5 // pred_check_branch
        %174 = sbr.rel (%p172) target = $region24
      $region23: #{tpu_custom_call.1} parent=5 // pred_region
        // Predicated region
        $region25: #{tpu_custom_call.1} parent=23 // pred_check
          %p175 = pneg %p48
        $region26: #{tpu_custom_call.1} parent=23 // pred_check_branch
          %177 = sbr.rel (%p175) target = $region28
        $region27: #{tpu_custom_call.1} parent=23 // pred_region
          %s178 = sand.u32 %s38, 1
          %s179 = scalar_lea.sflag [#allocation3], %s178
          %s180 = sand.u32 %s38, 1
          %s181 = smul.addr %s180, 8
          %s182 = scalar_lea.vmem [#allocation2], %s181
          %s184 = ssub.s32 128, 128
          %185 = vsyncadd %s179, %s184
          %s186 = smul.addr %s23, 128
          %s187 = scalar_lea.hbm %s0, %s186
          %s189 = sshll.u32 %s182, 4
          %s190 = int_to_ptr.vmem [resolvable:$true] %s189
          %192 = dma.hbm_to_vmem [thread:$0]  %s187, 128, %s190, %s179
        $region28: #{tpu_custom_call.1} parent=23 // pred_fallthru
          _
      $region24: #{tpu_custom_call.1} parent=5 // pred_fallthru
        _
      %p193 = scmp.le.s32.totalorder 1, %s16
      %p194 = scmp.lt.s32.totalorder %s16, 3
      %p195 = pnand %p193, %p194
      %p196 = pneg %p195
      // Predicated region
      $region29: #{tpu_custom_call.1} parent=5 // pred_check
        _
      $region30: #{tpu_custom_call.1} parent=5 // pred_check_branch
        %198 = sbr.rel (%p195) target = $region32
      $region31: #{tpu_custom_call.1} parent=5 // pred_region
        %s199 = ssub.s32 %s16, 1
        %s200 = sand.u32 %s41, 1
        %s201 = scalar_lea.sflag [#allocation3], %s200
        %s202 = sand.u32 %s41, 1
        %s203 = smul.addr %s202, 8
        %s204 = scalar_lea.vmem [#allocation2], %s203
        // Predicated region
        $region33: #{tpu_custom_call.1} parent=31 // pred_check
          %p205 = pneg %p54
        $region34: #{tpu_custom_call.1} parent=31 // pred_check_branch
          %207 = sbr.rel (%p205) target = $region36
        $region35: #{tpu_custom_call.1} parent=31 // pred_region
          %208 = dma.done %s201, 128
        $region36: #{tpu_custom_call.1} parent=31 // pred_fallthru
          _
        // Predicated region
        $region37: #{tpu_custom_call.1} parent=31 // pred_check
          %p209 = pneg %p80
        $region38: #{tpu_custom_call.1} parent=31 // pred_check_branch
          %211 = sbr.rel (%p209) target = $region40
        $region39: #{tpu_custom_call.1} parent=31 // pred_region
          %212 = dma.done [#allocation6], 4096
        $region40: #{tpu_custom_call.1} parent=31 // pred_fallthru
          _
        %s213 = sand.u32 %s41, 1
        %s214 = scalar_lea.sflag [#allocation3], %s213
        %s215 = sand.u32 %s41, 1
        %s216 = smul.addr %s215, 8
        %s217 = scalar_lea.vmem [#allocation2], %s216
        %p218 = pneg %p54
        %p219 = pneg %p51
        %p220 = pneg %p80
        %p221 = pneg %p77
        %p222 = scmp.lt.s32.totalorder %s26, 0
        %s223 = scalar_select %p222, %s26, 0
        %s224 = smul.addr %s223, 2
        %s225 = scalar_lea.vmem %s2, %s224
        %p226 = pneg %p106
        %p227 = pneg %p103
        %p228 = pneg %p134
        %p229 = pneg %p131
        %s230 = sand.u32 %s121, 1
        %s231 = scalar_lea.sflag [#allocation4], %s230
        %s232 = sand.u32 %s121, 1
        %s233 = smul.addr %s232, 8
        %s234 = scalar_lea.vmem [#allocation7], %s233
        %p235 = scmp.lt.s32.totalorder %s26, 0
        %s236 = scalar_select %p235, %s26, 0
        %s237 = smul.addr %s236, 2
        %s238 = scalar_lea.vmem %s2, %s237
        %v239 = vld [vmem:[%s204] sm:$0xff]
        %v240 = vld [vmem:[%s238] sm:$0x3]
        %v241 = vld [vmem:[#allocation5] sm:$0xff]
        %v242 = vld [vmem:[#allocation5 + $0x8] sm:$0xff]
        %v243 = vld [vmem:[#allocation5 + $0x10] sm:$0xff]
        %v244 = vld [vmem:[#allocation5 + $0x18] sm:$0xff]
        %v245 = vld [vmem:[#allocation5 + $0x20] sm:$0xff]
        %v246 = vld [vmem:[#allocation5 + $0x28] sm:$0xff]
        %v247 = vld [vmem:[#allocation5 + $0x30] sm:$0xff]
        %v248 = vld [vmem:[#allocation5 + $0x38] sm:$0xff]
        %v249 = vld [vmem:[#allocation5 + $0x40] sm:$0xff]
        %v250 = vld [vmem:[#allocation5 + $0x48] sm:$0xff]
        %v251 = vld [vmem:[#allocation5 + $0x50] sm:$0xff]
        %v252 = vld [vmem:[#allocation5 + $0x58] sm:$0xff]
        %v253 = vld [vmem:[#allocation5 + $0x60] sm:$0xff]
        %v254 = vld [vmem:[#allocation5 + $0x68] sm:$0xff]
        %v255 = vld [vmem:[#allocation5 + $0x70] sm:$0xff]
        %v256 = vld [vmem:[#allocation5 + $0x78] sm:$0xff]
        %v257 = vlaneseq
        %v258 = vshrl.u32 %v257, 7
        %v259 = vsub.s32 0, %v258
        %v260 = vrot.slane %v240, %v259
        %261 = vmatprep.subr.mxu0 0.0
        %262 = vmatpush1.msra.mxu0 %v241
        %263 = vmatprep.subr.mxu0 0.0
        %264 = vmatpush1.msra.mxu0 %v242
        %265 = vmatprep.subr.mxu0 0.0
        %266 = vmatpush1.msra.mxu0 %v243
        %267 = vmatprep.subr.mxu0 0.0
        %268 = vmatpush1.msra.mxu0 %v244
        %269 = vmatprep.subr.mxu0 0.0
        %270 = vmatpush1.msra.mxu0 %v245
        %271 = vmatprep.subr.mxu0 0.0
        %272 = vmatpush1.msra.mxu0 %v246
        %273 = vmatprep.subr.mxu0 0.0
        %274 = vmatpush1.msra.mxu0 %v247
        %275 = vmatprep.subr.mxu0 0.0
        %276 = vmatpush1.msra.mxu0 %v248
        %277 = vmatprep.subr.mxu0 0.0
        %278 = vmatpush1.msra.mxu0 %v249
        %279 = vmatprep.subr.mxu0 0.0
        %280 = vmatpush1.msra.mxu0 %v250
        %281 = vmatprep.subr.mxu0 0.0
        %282 = vmatpush1.msra.mxu0 %v251
        %283 = vmatprep.subr.mxu0 0.0
        %284 = vmatpush1.msra.mxu0 %v252
        %285 = vmatprep.subr.mxu0 0.0
        %286 = vmatpush1.msra.mxu0 %v253
        %287 = vmatprep.subr.mxu0 0.0
        %288 = vmatpush1.msra.mxu0 %v254
        %289 = vmatprep.subr.mxu0 0.0
        %290 = vmatpush1.msra.mxu0 %v255
        %291 = vmatprep.subr.mxu0 0.0
        %292 = vmatpush1.msra.mxu0 %v256
        %293 = vmatprep.subr.mxu0 0.0
        %294 = vmatpush1.msra.mxu0 0.0
        %295 = vmatprep.subr.mxu0 0.0
        %296 = vmatpush1.msra.mxu0 0.0
        %297 = vmatprep.subr.mxu0 0.0
        %298 = vmatpush1.msra.mxu0 0.0
        %299 = vmatprep.subr.mxu0 0.0
        %300 = vmatpush1.msra.mxu0 0.0
        %301 = vmatprep.subr.mxu0 0.0
        %302 = vmatpush1.msra.mxu0 0.0
        %303 = vmatprep.subr.mxu0 0.0
        %304 = vmatpush1.msra.mxu0 0.0
        %305 = vmatprep.subr.mxu0 0.0
        %306 = vmatpush1.msra.mxu0 0.0
        %307 = vmatprep.subr.mxu0 0.0
        %308 = vmatpush1.msra.mxu0 0.0
        %309 = vmatprep.subr.mxu0 0.0
        %310 = vmatpush1.msra.mxu0 0.0
        %311 = vmatprep.subr.mxu0 0.0
        %312 = vmatpush1.msra.mxu0 0.0
        %313 = vmatprep.subr.mxu0 0.0
        %314 = vmatpush1.msra.mxu0 0.0
        %315 = vmatprep.subr.mxu0 0.0
        %316 = vmatpush1.msra.mxu0 0.0
        %317 = vmatprep.subr.mxu0 0.0
        %318 = vmatpush1.msra.mxu0 0.0
        %319 = vmatprep.subr.mxu0 0.0
        %320 = vmatpush1.msra.mxu0 0.0
        %321 = vmatprep.subr.mxu0 0.0
        %322 = vmatpush1.msra.mxu0 0.0
        %323 = vmatprep.subr.mxu0 0.0
        %324 = vmatpush1.msra.mxu0 0.0
        %325 = vmatprep.mubr.f32.mxu0 0.0
        %326 = vmatmul.mubr.f32.gmra.mrb[0].mxu0 %v239
        %v327 = vpop.f32.mrb[0].mxu0
        %v328 = vadd.f32 %v260, %v327
        %v329 = vpop.f32.mrb[0].mxu0
        %330 = vdwg.mxu0
        %s331 = scalar_lea.vmem [#allocation5], 128
        %v332 = vld [vmem:[%s331] sm:$0xff]
        %v333 = vld [vmem:[%s331 + $0x8] sm:$0xff]
        %v334 = vld [vmem:[%s331 + $0x10] sm:$0xff]
        %v335 = vld [vmem:[%s331 + $0x18] sm:$0xff]
        %v336 = vld [vmem:[%s331 + $0x20] sm:$0xff]
        %v337 = vld [vmem:[%s331 + $0x28] sm:$0xff]
        %v338 = vld [vmem:[%s331 + $0x30] sm:$0xff]
        %v339 = vld [vmem:[%s331 + $0x38] sm:$0xff]
        %v340 = vld [vmem:[%s331 + $0x40] sm:$0xff]
        %v341 = vld [vmem:[%s331 + $0x48] sm:$0xff]
        %v342 = vld [vmem:[%s331 + $0x50] sm:$0xff]
        %v343 = vld [vmem:[%s331 + $0x58] sm:$0xff]
        %v344 = vld [vmem:[%s331 + $0x60] sm:$0xff]
        %v345 = vld [vmem:[%s331 + $0x68] sm:$0xff]
        %v346 = vld [vmem:[%s331 + $0x70] sm:$0xff]
        %v347 = vld [vmem:[%s331 + $0x78] sm:$0xff]
        %v348 = vlaneseq
        %v349 = vshrl.u32 %v348, 7
        %v350 = vsub.s32 1, %v349
        %v351 = vrot.slane %v240, %v350
        %352 = vmatprep.subr.mxu0 0.0
        %353 = vmatpush1.msra.mxu0 %v332
        %354 = vmatprep.subr.mxu0 0.0
        %355 = vmatpush1.msra.mxu0 %v333
        %356 = vmatprep.subr.mxu0 0.0
        %357 = vmatpush1.msra.mxu0 %v334
        %358 = vmatprep.subr.mxu0 0.0
        %359 = vmatpush1.msra.mxu0 %v335
        %360 = vmatprep.subr.mxu0 0.0
        %361 = vmatpush1.msra.mxu0 %v336
        %362 = vmatprep.subr.mxu0 0.0
        %363 = vmatpush1.msra.mxu0 %v337
        %364 = vmatprep.subr.mxu0 0.0
        %365 = vmatpush1.msra.mxu0 %v338
        %366 = vmatprep.subr.mxu0 0.0
        %367 = vmatpush1.msra.mxu0 %v339
        %368 = vmatprep.subr.mxu0 0.0
        %369 = vmatpush1.msra.mxu0 %v340
        %370 = vmatprep.subr.mxu0 0.0
        %371 = vmatpush1.msra.mxu0 %v341
        %372 = vmatprep.subr.mxu0 0.0
        %373 = vmatpush1.msra.mxu0 %v342
        %374 = vmatprep.subr.mxu0 0.0
        %375 = vmatpush1.msra.mxu0 %v343
        %376 = vmatprep.subr.mxu0 0.0
        %377 = vmatpush1.msra.mxu0 %v344
        %378 = vmatprep.subr.mxu0 0.0
        %379 = vmatpush1.msra.mxu0 %v345
        %380 = vmatprep.subr.mxu0 0.0
        %381 = vmatpush1.msra.mxu0 %v346
        %382 = vmatprep.subr.mxu0 0.0
        %383 = vmatpush1.msra.mxu0 %v347
        %384 = vmatprep.subr.mxu0 0.0
        %385 = vmatpush1.msra.mxu0 0.0
        %386 = vmatprep.subr.mxu0 0.0
        %387 = vmatpush1.msra.mxu0 0.0
        %388 = vmatprep.subr.mxu0 0.0
        %389 = vmatpush1.msra.mxu0 0.0
        %390 = vmatprep.subr.mxu0 0.0
        %391 = vmatpush1.msra.mxu0 0.0
        %392 = vmatprep.subr.mxu0 0.0
        %393 = vmatpush1.msra.mxu0 0.0
        %394 = vmatprep.subr.mxu0 0.0
        %395 = vmatpush1.msra.mxu0 0.0
        %396 = vmatprep.subr.mxu0 0.0
        %397 = vmatpush1.msra.mxu0 0.0
        %398 = vmatprep.subr.mxu0 0.0
        %399 = vmatpush1.msra.mxu0 0.0
        %400 = vmatprep.subr.mxu0 0.0
        %401 = vmatpush1.msra.mxu0 0.0
        %402 = vmatprep.subr.mxu0 0.0
        %403 = vmatpush1.msra.mxu0 0.0
        %404 = vmatprep.subr.mxu0 0.0
        %405 = vmatpush1.msra.mxu0 0.0
        %406 = vmatprep.subr.mxu0 0.0
        %407 = vmatpush1.msra.mxu0 0.0
        %408 = vmatprep.subr.mxu0 0.0
        %409 = vmatpush1.msra.mxu0 0.0
        %410 = vmatprep.subr.mxu0 0.0
        %411 = vmatpush1.msra.mxu0 0.0
        %412 = vmatprep.subr.mxu0 0.0
        %413 = vmatpush1.msra.mxu0 0.0
        %414 = vmatprep.subr.mxu0 0.0
        %415 = vmatpush1.msra.mxu0 0.0
        %416 = vmatprep.mubr.f32.mxu0 0.0
        %417 = vmatmul.mubr.f32.gmra.mrb[0].mxu0 %v239
        %v418 = vpop.f32.mrb[0].mxu0
        %v419 = vadd.f32 %v351, %v418
        %v420 = vpop.f32.mrb[0].mxu0
        %421 = vdwg.mxu0
        %v422 = vmul.f32 %v419, 0.5
        %v423 = vmul.f32 %v419, 0.70710677
        %v424 = verf.f32.pop %v423
        %v425 = vadd.f32 %v424, 1.0
        %v426 = vmul.f32 %v422, %v425
        %v427 = vmul.f32 %v328, %v426
        %428 = vst [vmem:[%s234] sm:$0xff] %v427
        %s429 = sand.u32 %s121, 1
        %s430 = scalar_lea.sflag [#allocation4], %s429
        %s431 = sand.u32 %s121, 1
        %s432 = smul.addr %s431, 8
        %s433 = scalar_lea.vmem [#allocation7], %s432
        // Predicated region
        $region41: #{tpu_custom_call.1} parent=31 // pred_check
          %p434 = pneg %p131
        $region42: #{tpu_custom_call.1} parent=31 // pred_check_branch
          %436 = sbr.rel (%p434) target = $region44
        $region43: #{tpu_custom_call.1} parent=31 // pred_region
          %s438 = ssub.s32 128, 128
          %439 = vsyncadd %s430, %s438
          %s440 = sadd.s32 %s26, %s25
          %s441 = smul.addr %s440, 128
          %s442 = scalar_lea.hbm %s3, %s441
          %s444 = sshll.u32 %s433, 4
          %s445 = int_to_ptr.vmem [resolvable:$true] %s444
          %447 = dma.vmem_to_hbm [thread:$0]  %s445, 128, %s442, %s430
        $region44: #{tpu_custom_call.1} parent=31 // pred_fallthru
          _
      $region32: #{tpu_custom_call.1} parent=5 // pred_fallthru
        _
      %p448 = scmp.le.s32.totalorder 2, %s16
      // Predicated region
      $region45: #{tpu_custom_call.1} parent=5 // pred_check
        %p449 = pneg %p448
      $region46: #{tpu_custom_call.1} parent=5 // pred_check_branch
        %451 = sbr.rel (%p449) target = $region48
      $region47: #{tpu_custom_call.1} parent=5 // pred_region
        %s452 = ssub.s32 %s16, 2
        // Predicated region
        $region49: #{tpu_custom_call.1} parent=47 // pred_check
          %p453 = pneg %p137
        $region50: #{tpu_custom_call.1} parent=47 // pred_check_branch
          %455 = sbr.rel (%p453) target = $region52
        $region51: #{tpu_custom_call.1} parent=47 // pred_region
          %s456 = sand.u32 %s122, 1
          %s457 = scalar_lea.sflag [#allocation4], %s456
          %s458 = sand.u32 %s122, 1
          %s459 = smul.addr %s458, 8
          %s460 = scalar_lea.vmem [#allocation7], %s459
          %461 = dma.done %s457, 128
        $region52: #{tpu_custom_call.1} parent=47 // pred_fallthru
          _
      $region48: #{tpu_custom_call.1} parent=5 // pred_fallthru
        _
    $region6: #{tpu_custom_call.1} parent=1 // loop_footer
      %s20 = sadd.s32 1, %s16
    $region7: #{tpu_custom_call.1} parent=1 // loop_footer_branch
      %15 = sbr.rel target = $region3
    $region8: #{tpu_custom_call.1} parent=1 // loop_exit
      _
    %462 = vsyncpa [#allocation3], 1
    %s463 = scalar_lea.sflag [#allocation3], 1
    %464 = vsyncpa %s463, 1
    %465 = vsyncpa [#allocation6], 1
    %466 = vsyncpa [#allocation4], 1
    %s467 = scalar_lea.sflag [#allocation4], 1
    %468 = vsyncpa %s467, 1

</llo_original>
